<compile_context>
chip_gen: v7x
topology: tpu7x:2x2x1
jax: 0.10.0
libtpu: 0.0.40
codegen_flags: <defaults>
</compile_context>

<pallas_src>
import jax
import jax.numpy as jnp
from jax.experimental import pallas as pl
from jax.experimental.pallas import tpu as pltpu

HIDDEN = 16
LANES = 128


def mlp_kernel(e_ref, r_ref, ab_ref, x_ref, o_ref):
    # x_ref / o_ref: (TILE_ROWS, 128) f32, batch elements lane-dense.
    # e_ref / r_ref: (16,) f32 in SMEM; ab_ref: (2,) f32 = (alpha, beta) in SMEM.
    x = x_ref[...]
    # Affine part of the whole network (fc1/fc3 linear parts + biases folded).
    acc0 = x * ab_ref[0] + ab_ref[1]
    acc1 = jnp.zeros_like(x)
    # |.|-kink contribution of each of the 16 ReLU units (static unroll, VPU).
    for j in range(0, HIDDEN, 2):  # two accumulators -> shorter dep chain
        acc0 = acc0 + jnp.abs(x + r_ref[j]) * e_ref[j]
        acc1 = acc1 + jnp.abs(x + r_ref[j + 1]) * e_ref[j + 1]
    o_ref[...] = (acc0 + acc1).astype(o_ref.dtype)


def _fold_params(w1, b1, w2, b2):
    """Fold fc1/fc3 params into (e, r, [alpha, beta]) for the |.| formulation."""
    w1f = w1.reshape(-1).astype(jnp.float32)   # (16,)
    b1f = b1.reshape(-1).astype(jnp.float32)   # (16,)
    w2f = w2.reshape(-1).astype(jnp.float32)   # (16,)
    b2f = b2.reshape(-1).astype(jnp.float32)   # (1,)

    nz = w1f != 0.0
    safe_w1 = jnp.where(nz, w1f, 1.0)
    r = jnp.where(nz, b1f / safe_w1, 0.0)                    # kink locations
    e = jnp.where(nz, 0.5 * w2f * jnp.abs(w1f), 0.0)         # kink slopes
    alpha = 0.5 * jnp.sum(w1f * w2f)
    # Units with w1 == 0 contribute the constant w2 * relu(b1) = w2*(b1+|b1|)/2;
    # its |b1| half goes here (the b1/2 half is already in sum(w2*b1)/2).
    beta = (0.5 * jnp.sum(w2f * b1f) + b2f[0]
            + jnp.sum(jnp.where(nz, 0.0, 0.5 * w2f * jnp.abs(b1f))))
    ab = jnp.stack([alpha, beta])                            # (2,)
    return e, r, ab


def simple_nn_forward(x, w1, b1, w2, b2, *, block_rows=2048):
    """SimpleNN forward. x: [B, 1] f32 -> [B, 1] f32."""
    assert block_rows % 8 == 0
    B = x.shape[0]

    # Lane-dense layout: batch -> (rows, 128); pad rows to a sublane/tile multiple.
    rows = pl.cdiv(B, LANES)
    rows8 = ((rows + 7) // 8) * 8          # sublane multiple of 8
    tr = min(block_rows, rows8)            # tile rows (multiple of 8)
    rows_padded = pl.cdiv(rows8, tr) * tr
    b_padded = rows_padded * LANES

    x_2d = jnp.pad(x.reshape(-1).astype(jnp.float32),
                   (0, b_padded - B)).reshape(rows_padded, LANES)

    e, r, ab = _fold_params(w1, b1, w2, b2)

    out_2d = pl.pallas_call(
        mlp_kernel,
        out_shape=jax.ShapeDtypeStruct((rows_padded, LANES), jnp.float32),
        grid=(rows_padded // tr,),
        in_specs=[
            pl.BlockSpec(memory_space=pltpu.MemorySpace.SMEM),   # e  (16,)
            pl.BlockSpec(memory_space=pltpu.MemorySpace.SMEM),   # r  (16,)
            pl.BlockSpec(memory_space=pltpu.MemorySpace.SMEM),   # ab (2,)
            pl.BlockSpec((tr, LANES), lambda i: (i, 0)),         # x tile
        ],
        out_specs=pl.BlockSpec((tr, LANES), lambda i: (i, 0)),
        compiler_params=pltpu.CompilerParams(
            dimension_semantics=("parallel",)),   # 2 TCs on v7x; harmless elsewhere
    )(e, r, ab, x_2d)
    return out_2d.reshape(-1)[:B].reshape(B, 1)


def init_params(key):
    # Deterministic init mimicking nn.Linear default (uniform in +/-1/sqrt(fan_in)).
    k1, k2, k3, k4 = jax.random.split(key, 4)
    bound1 = 1.0 / jnp.sqrt(1.0)
    bound2 = 1.0 / jnp.sqrt(16.0)
    w1 = jax.random.uniform(k1, (1, 16), jnp.float32, -bound1, bound1)   # fc1.weight.T
    b1 = jax.random.uniform(k2, (1, 16), jnp.float32, -bound1, bound1)   # fc1.bias
    w2 = jax.random.uniform(k3, (16, 1), jnp.float32, -bound2, bound2)   # fc3.weight.T
    b2 = jax.random.uniform(k4, (1, 1), jnp.float32, -bound2, bound2)    # fc3.bias
    return w1, b1, w2, b2


def _reference(x, w1, b1, w2, b2):
    return jnp.maximum(x @ w1 + b1, 0.0) @ w2 + b2


if __name__ == "__main__":
    key = jax.random.PRNGKey(0)
    kx, kx2, kp = jax.random.split(key, 3)
    w1, b1, w2, b2 = init_params(kp)

    # Small-batch case (matches original spec scale).
    B = 8
    x = jax.random.normal(kx, (B, 1), jnp.float32)
    out = jax.block_until_ready(simple_nn_forward(x, w1, b1, w2, b2))
    ref = _reference(x, w1, b1, w2, b2)
    assert out.shape == (B, 1)
    assert jnp.allclose(out, ref, atol=1e-5, rtol=1e-5)

    # Non-multiple batch to exercise the lane-dense padding / grid path.
    B2 = 300
    x2 = jax.random.normal(kx2, (B2, 1), jnp.float32)
    out2 = jax.block_until_ready(simple_nn_forward(x2, w1, b1, w2, b2))
    ref2 = _reference(x2, w1, b1, w2, b2)
    assert out2.shape == (B2, 1)
    assert jnp.allclose(out2, ref2, atol=1e-5, rtol=1e-5)

    print("KERNEL_OK")
</pallas_src>

<mosaic_0001>
module attributes {stable_mosaic.version = 11 : i64} {
  func.func @mlp_kernel(%arg0: i32, %arg1: memref<16xf32, #tpu.memory_space<smem>>, %arg2: memref<16xf32, #tpu.memory_space<smem>>, %arg3: memref<2xf32, #tpu.memory_space<smem>>, %arg4: memref<8x128xf32, #tpu.memory_space<vmem>>, %arg5: memref<8x128xf32, #tpu.memory_space<vmem>>) attributes {dimension_semantics = [#tpu.dimension_semantics<parallel>], iteration_bounds = array<i64: 1>, scalar_prefetch = 0 : i64, scratch_operands = 0 : i64, tpu.core_type = #tpu.core_type<tc>, window_params = [{transform_indices = @transform_0, window_bounds = array<i64: 16>}, {transform_indices = @transform_1, window_bounds = array<i64: 16>}, {transform_indices = @transform_2, window_bounds = array<i64: 2>}, {transform_indices = @transform_3, window_bounds = array<i64: 8, 128>}, {transform_indices = @transform_4, window_bounds = array<i64: 8, 128>}]} {
    %c0 = arith.constant 0 : index
    %c0_0 = arith.constant 0 : index
    %0 = vector.load %arg4[%c0, %c0_0] : memref<8x128xf32, #tpu.memory_space<vmem>>, vector<8x128xf32>
    %c0_1 = arith.constant 0 : index
    %1 = memref.load %arg3[%c0_1] : memref<2xf32, #tpu.memory_space<smem>>
    %2 = vector.broadcast %1 : f32 to vector<8x128xf32>
    %3 = arith.mulf %0, %2 : vector<8x128xf32>
    %c1 = arith.constant 1 : index
    %4 = memref.load %arg3[%c1] : memref<2xf32, #tpu.memory_space<smem>>
    %5 = vector.broadcast %4 : f32 to vector<8x128xf32>
    %6 = arith.addf %3, %5 : vector<8x128xf32>
    %cst = arith.constant 0.000000e+00 : f32
    %7 = vector.broadcast %cst : f32 to vector<8x128xf32>
    %c0_2 = arith.constant 0 : index
    %8 = memref.load %arg2[%c0_2] : memref<16xf32, #tpu.memory_space<smem>>
    %9 = vector.broadcast %8 : f32 to vector<8x128xf32>
    %10 = arith.addf %0, %9 : vector<8x128xf32>
    %11 = math.absf %10 : vector<8x128xf32>
    %c0_3 = arith.constant 0 : index
    %12 = memref.load %arg1[%c0_3] : memref<16xf32, #tpu.memory_space<smem>>
    %13 = vector.broadcast %12 : f32 to vector<8x128xf32>
    %14 = arith.mulf %11, %13 : vector<8x128xf32>
    %15 = arith.addf %6, %14 : vector<8x128xf32>
    %c1_4 = arith.constant 1 : index
    %16 = memref.load %arg2[%c1_4] : memref<16xf32, #tpu.memory_space<smem>>
    %17 = vector.broadcast %16 : f32 to vector<8x128xf32>
    %18 = arith.addf %0, %17 : vector<8x128xf32>
    %19 = math.absf %18 : vector<8x128xf32>
    %c1_5 = arith.constant 1 : index
    %20 = memref.load %arg1[%c1_5] : memref<16xf32, #tpu.memory_space<smem>>
    %21 = vector.broadcast %20 : f32 to vector<8x128xf32>
    %22 = arith.mulf %19, %21 : vector<8x128xf32>
    %23 = arith.addf %7, %22 : vector<8x128xf32>
    %c2 = arith.constant 2 : index
    %24 = memref.load %arg2[%c2] : memref<16xf32, #tpu.memory_space<smem>>
    %25 = vector.broadcast %24 : f32 to vector<8x128xf32>
    %26 = arith.addf %0, %25 : vector<8x128xf32>
    %27 = math.absf %26 : vector<8x128xf32>
    %c2_6 = arith.constant 2 : index
    %28 = memref.load %arg1[%c2_6] : memref<16xf32, #tpu.memory_space<smem>>
    %29 = vector.broadcast %28 : f32 to vector<8x128xf32>
    %30 = arith.mulf %27, %29 : vector<8x128xf32>
    %31 = arith.addf %15, %30 : vector<8x128xf32>
    %c3 = arith.constant 3 : index
    %32 = memref.load %arg2[%c3] : memref<16xf32, #tpu.memory_space<smem>>
    %33 = vector.broadcast %32 : f32 to vector<8x128xf32>
    %34 = arith.addf %0, %33 : vector<8x128xf32>
    %35 = math.absf %34 : vector<8x128xf32>
    %c3_7 = arith.constant 3 : index
    %36 = memref.load %arg1[%c3_7] : memref<16xf32, #tpu.memory_space<smem>>
    %37 = vector.broadcast %36 : f32 to vector<8x128xf32>
    %38 = arith.mulf %35, %37 : vector<8x128xf32>
    %39 = arith.addf %23, %38 : vector<8x128xf32>
    %c4 = arith.constant 4 : index
    %40 = memref.load %arg2[%c4] : memref<16xf32, #tpu.memory_space<smem>>
    %41 = vector.broadcast %40 : f32 to vector<8x128xf32>
    %42 = arith.addf %0, %41 : vector<8x128xf32>
    %43 = math.absf %42 : vector<8x128xf32>
    %c4_8 = arith.constant 4 : index
    %44 = memref.load %arg1[%c4_8] : memref<16xf32, #tpu.memory_space<smem>>
    %45 = vector.broadcast %44 : f32 to vector<8x128xf32>
    %46 = arith.mulf %43, %45 : vector<8x128xf32>
    %47 = arith.addf %31, %46 : vector<8x128xf32>
    %c5 = arith.constant 5 : index
    %48 = memref.load %arg2[%c5] : memref<16xf32, #tpu.memory_space<smem>>
    %49 = vector.broadcast %48 : f32 to vector<8x128xf32>
    %50 = arith.addf %0, %49 : vector<8x128xf32>
    %51 = math.absf %50 : vector<8x128xf32>
    %c5_9 = arith.constant 5 : index
    %52 = memref.load %arg1[%c5_9] : memref<16xf32, #tpu.memory_space<smem>>
    %53 = vector.broadcast %52 : f32 to vector<8x128xf32>
    %54 = arith.mulf %51, %53 : vector<8x128xf32>
    %55 = arith.addf %39, %54 : vector<8x128xf32>
    %c6 = arith.constant 6 : index
    %56 = memref.load %arg2[%c6] : memref<16xf32, #tpu.memory_space<smem>>
    %57 = vector.broadcast %56 : f32 to vector<8x128xf32>
    %58 = arith.addf %0, %57 : vector<8x128xf32>
    %59 = math.absf %58 : vector<8x128xf32>
    %c6_10 = arith.constant 6 : index
    %60 = memref.load %arg1[%c6_10] : memref<16xf32, #tpu.memory_space<smem>>
    %61 = vector.broadcast %60 : f32 to vector<8x128xf32>
    %62 = arith.mulf %59, %61 : vector<8x128xf32>
    %63 = arith.addf %47, %62 : vector<8x128xf32>
    %c7 = arith.constant 7 : index
    %64 = memref.load %arg2[%c7] : memref<16xf32, #tpu.memory_space<smem>>
    %65 = vector.broadcast %64 : f32 to vector<8x128xf32>
    %66 = arith.addf %0, %65 : vector<8x128xf32>
    %67 = math.absf %66 : vector<8x128xf32>
    %c7_11 = arith.constant 7 : index
    %68 = memref.load %arg1[%c7_11] : memref<16xf32, #tpu.memory_space<smem>>
    %69 = vector.broadcast %68 : f32 to vector<8x128xf32>
    %70 = arith.mulf %67, %69 : vector<8x128xf32>
    %71 = arith.addf %55, %70 : vector<8x128xf32>
    %c8 = arith.constant 8 : index
    %72 = memref.load %arg2[%c8] : memref<16xf32, #tpu.memory_space<smem>>
    %73 = vector.broadcast %72 : f32 to vector<8x128xf32>
    %74 = arith.addf %0, %73 : vector<8x128xf32>
    %75 = math.absf %74 : vector<8x128xf32>
    %c8_12 = arith.constant 8 : index
    %76 = memref.load %arg1[%c8_12] : memref<16xf32, #tpu.memory_space<smem>>
    %77 = vector.broadcast %76 : f32 to vector<8x128xf32>
    %78 = arith.mulf %75, %77 : vector<8x128xf32>
    %79 = arith.addf %63, %78 : vector<8x128xf32>
    %c9 = arith.constant 9 : index
    %80 = memref.load %arg2[%c9] : memref<16xf32, #tpu.memory_space<smem>>
    %81 = vector.broadcast %80 : f32 to vector<8x128xf32>
    %82 = arith.addf %0, %81 : vector<8x128xf32>
    %83 = math.absf %82 : vector<8x128xf32>
    %c9_13 = arith.constant 9 : index
    %84 = memref.load %arg1[%c9_13] : memref<16xf32, #tpu.memory_space<smem>>
    %85 = vector.broadcast %84 : f32 to vector<8x128xf32>
    %86 = arith.mulf %83, %85 : vector<8x128xf32>
    %87 = arith.addf %71, %86 : vector<8x128xf32>
    %c10 = arith.constant 10 : index
    %88 = memref.load %arg2[%c10] : memref<16xf32, #tpu.memory_space<smem>>
    %89 = vector.broadcast %88 : f32 to vector<8x128xf32>
    %90 = arith.addf %0, %89 : vector<8x128xf32>
    %91 = math.absf %90 : vector<8x128xf32>
    %c10_14 = arith.constant 10 : index
    %92 = memref.load %arg1[%c10_14] : memref<16xf32, #tpu.memory_space<smem>>
    %93 = vector.broadcast %92 : f32 to vector<8x128xf32>
    %94 = arith.mulf %91, %93 : vector<8x128xf32>
    %95 = arith.addf %79, %94 : vector<8x128xf32>
    %c11 = arith.constant 11 : index
    %96 = memref.load %arg2[%c11] : memref<16xf32, #tpu.memory_space<smem>>
    %97 = vector.broadcast %96 : f32 to vector<8x128xf32>
    %98 = arith.addf %0, %97 : vector<8x128xf32>
    %99 = math.absf %98 : vector<8x128xf32>
    %c11_15 = arith.constant 11 : index
    %100 = memref.load %arg1[%c11_15] : memref<16xf32, #tpu.memory_space<smem>>
    %101 = vector.broadcast %100 : f32 to vector<8x128xf32>
    %102 = arith.mulf %99, %101 : vector<8x128xf32>
    %103 = arith.addf %87, %102 : vector<8x128xf32>
    %c12 = arith.constant 12 : index
    %104 = memref.load %arg2[%c12] : memref<16xf32, #tpu.memory_space<smem>>
    %105 = vector.broadcast %104 : f32 to vector<8x128xf32>
    %106 = arith.addf %0, %105 : vector<8x128xf32>
    %107 = math.absf %106 : vector<8x128xf32>
    %c12_16 = arith.constant 12 : index
    %108 = memref.load %arg1[%c12_16] : memref<16xf32, #tpu.memory_space<smem>>
    %109 = vector.broadcast %108 : f32 to vector<8x128xf32>
    %110 = arith.mulf %107, %109 : vector<8x128xf32>
    %111 = arith.addf %95, %110 : vector<8x128xf32>
    %c13 = arith.constant 13 : index
    %112 = memref.load %arg2[%c13] : memref<16xf32, #tpu.memory_space<smem>>
    %113 = vector.broadcast %112 : f32 to vector<8x128xf32>
    %114 = arith.addf %0, %113 : vector<8x128xf32>
    %115 = math.absf %114 : vector<8x128xf32>
    %c13_17 = arith.constant 13 : index
    %116 = memref.load %arg1[%c13_17] : memref<16xf32, #tpu.memory_space<smem>>
    %117 = vector.broadcast %116 : f32 to vector<8x128xf32>
    %118 = arith.mulf %115, %117 : vector<8x128xf32>
    %119 = arith.addf %103, %118 : vector<8x128xf32>
    %c14 = arith.constant 14 : index
    %120 = memref.load %arg2[%c14] : memref<16xf32, #tpu.memory_space<smem>>
    %121 = vector.broadcast %120 : f32 to vector<8x128xf32>
    %122 = arith.addf %0, %121 : vector<8x128xf32>
    %123 = math.absf %122 : vector<8x128xf32>
    %c14_18 = arith.constant 14 : index
    %124 = memref.load %arg1[%c14_18] : memref<16xf32, #tpu.memory_space<smem>>
    %125 = vector.broadcast %124 : f32 to vector<8x128xf32>
    %126 = arith.mulf %123, %125 : vector<8x128xf32>
    %127 = arith.addf %111, %126 : vector<8x128xf32>
    %c15 = arith.constant 15 : index
    %128 = memref.load %arg2[%c15] : memref<16xf32, #tpu.memory_space<smem>>
    %129 = vector.broadcast %128 : f32 to vector<8x128xf32>
    %130 = arith.addf %0, %129 : vector<8x128xf32>
    %131 = math.absf %130 : vector<8x128xf32>
    %c15_19 = arith.constant 15 : index
    %132 = memref.load %arg1[%c15_19] : memref<16xf32, #tpu.memory_space<smem>>
    %133 = vector.broadcast %132 : f32 to vector<8x128xf32>
    %134 = arith.mulf %131, %133 : vector<8x128xf32>
    %135 = arith.addf %119, %134 : vector<8x128xf32>
    %136 = arith.addf %127, %135 : vector<8x128xf32>
    %c0_20 = arith.constant 0 : index
    %c0_21 = arith.constant 0 : index
    %137 = vector.load %arg5[%c0_20, %c0_21] : memref<8x128xf32, #tpu.memory_space<vmem>>, vector<8x128xf32>
    tpu.vector_store %arg5[%c0_20, %c0_21], %136 {strides = array<i32>} : memref<8x128xf32, #tpu.memory_space<vmem>>, vector<8x128xf32>,
    return
  }
  func.func @transform_0(%arg0: i32) -> i32 {
    %c0_i32 = arith.constant 0 : i32
    %c0_i32_0 = arith.constant 0 : i32
    return %c0_i32 : i32
  }
  func.func @transform_1(%arg0: i32) -> i32 {
    %c0_i32 = arith.constant 0 : i32
    %c0_i32_0 = arith.constant 0 : i32
    return %c0_i32 : i32
  }
  func.func @transform_2(%arg0: i32) -> i32 {
    %c0_i32 = arith.constant 0 : i32
    %c0_i32_0 = arith.constant 0 : i32
    return %c0_i32 : i32
  }
  func.func @transform_3(%arg0: i32) -> (i32, i32) {
    %c0_i32 = arith.constant 0 : i32
    %c0_i32_0 = arith.constant 0 : i32
    return %arg0, %c0_i32 : i32, i32
  }
  func.func @transform_4(%arg0: i32) -> (i32, i32) {
    %c0_i32 = arith.constant 0 : i32
    %c0_i32_0 = arith.constant 0 : i32
    return %arg0, %c0_i32 : i32, i32
  }
}

</mosaic_0001>

<llo_original>
// kernel: tpu_custom_call.1
$region0: #{tpu_custom_call.1}
  #allocation0 [shape = 'u32[]', space=smem, size = 0x4, offset = 0x4, fixed_abs, tag = 'smem constant byte address 0x4 - core index']
  #allocation1 [shape = 'u32[144,128]{1,0:T(1,128)}', space=vmem, size = 0x12000, scoped, tag = 'internal scratch']
  %s0 = inlined_call_operand.hbm [shape: f32[16], index: 0, kind: input, shape index: {}]
  %s1 = inlined_call_operand.vmem [shape: f32[16], index: 1, kind: input, shape index: {}]
  %s2 = inlined_call_operand.vmem [shape: f32[2], index: 2, kind: input, shape index: {}]
  %s3 = inlined_call_operand.vmem [shape: f32[8,128], index: 3, kind: input, shape index: {}]
  %s4 = inlined_call_operand.hbm [shape: f32[8,128], index: 4, kind: output, shape index: {}]
  %s5 = sld [smem:[#allocation0]]
  $region38: #{tpu_custom_call.1} parent=0
    _
  %s7 = ssub.s32 1, %s5
  %s8 = scalar_select 0, %s7, %s5
  $region1: #{tpu_custom_call.1} parent=0
    #allocation2 [shape = 'u8[512]{0}', space=smem, size = 0x200, scoped, tag = 'input window, operand 0, single buffered']
    #allocation3 [shape = 's32[1]{0}', space=sflag, size = 0x4, scoped, tag = 'scoped memory for tpu_custom_call.1']
    #allocation4 [shape = 's32[1]{0}', space=sflag, size = 0x4, scoped, tag = 'scoped memory for tpu_custom_call.1']
    #allocation5 [shape = 's32[1]{0}', space=sflag, size = 0x4, scoped, tag = 'scoped memory for tpu_custom_call.1']
    #allocation6 [shape = 'u8[512]{0}', space=smem, size = 0x200, scoped, tag = 'input window, operand 1, single buffered']
    #allocation7 [shape = 'u8[512]{0}', space=smem, size = 0x200, scoped, tag = 'input window, operand 2, single buffered']
    #allocation8 [shape = 's32[1]{0}', space=sflag, size = 0x4, scoped, tag = 'scoped memory for tpu_custom_call.1']
    #allocation9 [shape = 'u8[4096]{0}', space=vmem, size = 0x1000, scoped, tag = 'output window, operand 0, single buffered']
    %9 = vsyncpa [#allocation4], 0
    %10 = vsyncpa [#allocation5], 0
    %11 = vsyncpa [#allocation8], 0
    %12 = vsyncpa [#allocation3], 0
    // Predicated region
    $region2: #{tpu_custom_call.1} parent=1 // pred_check
      _
    $region3: #{tpu_custom_call.1} parent=1 // pred_check_branch
      %14 = sbr.rel (0) target = $region5
    $region4: #{tpu_custom_call.1} parent=1 // pred_region
      %s16 = ssub.s32 16, 16
      %17 = vsyncadd [#allocation4], %s16
      %20 = dma.hbm_to_smem %s0, 16, [#allocation2], [#allocation4]
    $region5: #{tpu_custom_call.1} parent=1 // pred_fallthru
      _
    // Predicated region
    $region6: #{tpu_custom_call.1} parent=1 // pred_check
      _
    $region7: #{tpu_custom_call.1} parent=1 // pred_check_branch
      %22 = sbr.rel (0) target = $region9
    $region8: #{tpu_custom_call.1} parent=1 // pred_region
      %s24 = ssub.s32 16, 16
      %25 = vsyncadd [#allocation5], %s24
      %s27 = sshll.u32 %s1, 4
      %s28 = int_to_ptr.vmem [resolvable:$true] %s27
      %30 = dma.vmem_to_smem %s28, 16, [#allocation6], [#allocation5]
    $region9: #{tpu_custom_call.1} parent=1 // pred_fallthru
      _
    // Predicated region
    $region10: #{tpu_custom_call.1} parent=1 // pred_check
      _
    $region11: #{tpu_custom_call.1} parent=1 // pred_check_branch
      %32 = sbr.rel (0) target = $region13
    $region12: #{tpu_custom_call.1} parent=1 // pred_region
      %s34 = ssub.s32 16, 16
      %35 = vsyncadd [#allocation8], %s34
      %s37 = sshll.u32 %s2, 4
      %s38 = int_to_ptr.vmem [resolvable:$true] %s37
      %40 = dma.vmem_to_smem %s38, 16, [#allocation7], [#allocation8]
    $region13: #{tpu_custom_call.1} parent=1 // pred_fallthru
      _
    // Predicated region
    $region14: #{tpu_custom_call.1} parent=1 // pred_check
      _
    $region15: #{tpu_custom_call.1} parent=1 // pred_check_branch
      %42 = sbr.rel (0) target = $region17
    $region16: #{tpu_custom_call.1} parent=1 // pred_region
      _
    $region17: #{tpu_custom_call.1} parent=1 // pred_fallthru
      _
    // Predicated region
    $region18: #{tpu_custom_call.1} parent=1 // pred_check
      _
    $region19: #{tpu_custom_call.1} parent=1 // pred_check_branch
      %44 = sbr.rel (0) target = $region21
    $region20: #{tpu_custom_call.1} parent=1 // pred_region
      %45 = dma.done [#allocation4], 16
    $region21: #{tpu_custom_call.1} parent=1 // pred_fallthru
      _
    // Predicated region
    $region22: #{tpu_custom_call.1} parent=1 // pred_check
      _
    $region23: #{tpu_custom_call.1} parent=1 // pred_check_branch
      %47 = sbr.rel (0) target = $region25
    $region24: #{tpu_custom_call.1} parent=1 // pred_region
      %48 = dma.done [#allocation5], 16
    $region25: #{tpu_custom_call.1} parent=1 // pred_fallthru
      _
    // Predicated region
    $region26: #{tpu_custom_call.1} parent=1 // pred_check
      _
    $region27: #{tpu_custom_call.1} parent=1 // pred_check_branch
      %50 = sbr.rel (0) target = $region29
    $region28: #{tpu_custom_call.1} parent=1 // pred_region
      %51 = dma.done [#allocation8], 16
    $region29: #{tpu_custom_call.1} parent=1 // pred_fallthru
      _
    %52 = sfence
    %v53 = vld [vmem:[%s3] sm:$0xff]
    %s54 = sld [smem:[#allocation7]]
    %v55 = vstv %s54
    %v56 = vmul.f32 %v53, %v55
    %s57 = sld [smem:[#allocation7 + $0x1]]
    %v58 = vstv %s57
    %v59 = vadd.f32 %v56, %v58
    %s60 = sld [smem:[#allocation6]]
    %v61 = vstv %s60
    %v62 = vadd.f32 %v53, %v61
    %v63 = vand.u32 2147483647, %v62
    %s64 = sld [smem:[#allocation2]]
    %v65 = vstv %s64
    %v66 = vmul.f32 %v63, %v65
    %v67 = vadd.f32 %v59, %v66
    %s68 = sld [smem:[#allocation6 + $0x1]]
    %v69 = vstv %s68
    %v70 = vadd.f32 %v53, %v69
    %v71 = vand.u32 2147483647, %v70
    %s72 = sld [smem:[#allocation2 + $0x1]]
    %v73 = vstv %s72
    %v74 = vmul.f32 %v71, %v73
    %v75 = vadd.f32 %v74, 0.0
    %s76 = sld [smem:[#allocation6 + $0x2]]
    %v77 = vstv %s76
    %v78 = vadd.f32 %v53, %v77
    %v79 = vand.u32 2147483647, %v78
    %s80 = sld [smem:[#allocation2 + $0x2]]
    %v81 = vstv %s80
    %v82 = vmul.f32 %v79, %v81
    %v83 = vadd.f32 %v67, %v82
    %s84 = sld [smem:[#allocation6 + $0x3]]
    %v85 = vstv %s84
    %v86 = vadd.f32 %v53, %v85
    %v87 = vand.u32 2147483647, %v86
    %s88 = sld [smem:[#allocation2 + $0x3]]
    %v89 = vstv %s88
    %v90 = vmul.f32 %v87, %v89
    %v91 = vadd.f32 %v75, %v90
    %s92 = sld [smem:[#allocation6 + $0x4]]
    %v93 = vstv %s92
    %v94 = vadd.f32 %v53, %v93
    %v95 = vand.u32 2147483647, %v94
    %s96 = sld [smem:[#allocation2 + $0x4]]
    %v97 = vstv %s96
    %v98 = vmul.f32 %v95, %v97
    %v99 = vadd.f32 %v83, %v98
    %s100 = sld [smem:[#allocation6 + $0x5]]
    %v101 = vstv %s100
    %v102 = vadd.f32 %v53, %v101
    %v103 = vand.u32 2147483647, %v102
    %s104 = sld [smem:[#allocation2 + $0x5]]
    %v105 = vstv %s104
    %v106 = vmul.f32 %v103, %v105
    %v107 = vadd.f32 %v91, %v106
    %s108 = sld [smem:[#allocation6 + $0x6]]
    %v109 = vstv %s108
    %v110 = vadd.f32 %v53, %v109
    %v111 = vand.u32 2147483647, %v110
    %s112 = sld [smem:[#allocation2 + $0x6]]
    %v113 = vstv %s112
    %v114 = vmul.f32 %v111, %v113
    %v115 = vadd.f32 %v99, %v114
    %s116 = sld [smem:[#allocation6 + $0x7]]
    %v117 = vstv %s116
    %v118 = vadd.f32 %v53, %v117
    %v119 = vand.u32 2147483647, %v118
    %s120 = sld [smem:[#allocation2 + $0x7]]
    %v121 = vstv %s120
    %v122 = vmul.f32 %v119, %v121
    %v123 = vadd.f32 %v107, %v122
    %s124 = sld [smem:[#allocation6 + $0x8]]
    %v125 = vstv %s124
    %v126 = vadd.f32 %v53, %v125
    %v127 = vand.u32 2147483647, %v126
    %s128 = sld [smem:[#allocation2 + $0x8]]
    %v129 = vstv %s128
    %v130 = vmul.f32 %v127, %v129
    %v131 = vadd.f32 %v115, %v130
    %s132 = sld [smem:[#allocation6 + $0x9]]
    %v133 = vstv %s132
    %v134 = vadd.f32 %v53, %v133
    %v135 = vand.u32 2147483647, %v134
    %s136 = sld [smem:[#allocation2 + $0x9]]
    %v137 = vstv %s136
    %v138 = vmul.f32 %v135, %v137
    %v139 = vadd.f32 %v123, %v138
    %s140 = sld [smem:[#allocation6 + $0xa]]
    %v141 = vstv %s140
    %v142 = vadd.f32 %v53, %v141
    %v143 = vand.u32 2147483647, %v142
    %s144 = sld [smem:[#allocation2 + $0xa]]
    %v145 = vstv %s144
    %v146 = vmul.f32 %v143, %v145
    %v147 = vadd.f32 %v131, %v146
    %s148 = sld [smem:[#allocation6 + $0xb]]
    %v149 = vstv %s148
    %v150 = vadd.f32 %v53, %v149
    %v151 = vand.u32 2147483647, %v150
    %s152 = sld [smem:[#allocation2 + $0xb]]
    %v153 = vstv %s152
    %v154 = vmul.f32 %v151, %v153
    %v155 = vadd.f32 %v139, %v154
    %s156 = sld [smem:[#allocation6 + $0xc]]
    %v157 = vstv %s156
    %v158 = vadd.f32 %v53, %v157
    %v159 = vand.u32 2147483647, %v158
    %s160 = sld [smem:[#allocation2 + $0xc]]
    %v161 = vstv %s160
    %v162 = vmul.f32 %v159, %v161
    %v163 = vadd.f32 %v147, %v162
    %s164 = sld [smem:[#allocation6 + $0xd]]
    %v165 = vstv %s164
    %v166 = vadd.f32 %v53, %v165
    %v167 = vand.u32 2147483647, %v166
    %s168 = sld [smem:[#allocation2 + $0xd]]
    %v169 = vstv %s168
    %v170 = vmul.f32 %v167, %v169
    %v171 = vadd.f32 %v155, %v170
    %s172 = sld [smem:[#allocation6 + $0xe]]
    %v173 = vstv %s172
    %v174 = vadd.f32 %v53, %v173
    %v175 = vand.u32 2147483647, %v174
    %s176 = sld [smem:[#allocation2 + $0xe]]
    %v177 = vstv %s176
    %v178 = vmul.f32 %v175, %v177
    %v179 = vadd.f32 %v163, %v178
    %s180 = sld [smem:[#allocation6 + $0xf]]
    %v181 = vstv %s180
    %v182 = vadd.f32 %v53, %v181
    %v183 = vand.u32 2147483647, %v182
    %s184 = sld [smem:[#allocation2 + $0xf]]
    %v185 = vstv %s184
    %v186 = vmul.f32 %v183, %v185
    %v187 = vadd.f32 %v171, %v186
    %v188 = vadd.f32 %v179, %v187
    %189 = vst [vmem:[#allocation9] sm:$0xff] %v188
    // Predicated region
    $region30: #{tpu_custom_call.1} parent=1 // pred_check
      _
    $region31: #{tpu_custom_call.1} parent=1 // pred_check_branch
      %191 = sbr.rel (0) target = $region33
    $region32: #{tpu_custom_call.1} parent=1 // pred_region
      %s193 = ssub.s32 128, 128
      %194 = vsyncadd [#allocation3], %s193
      %s196 = sshll.u32 [#allocation9], 4
      %s197 = int_to_ptr.vmem [resolvable:$true] %s196
      %199 = dma.vmem_to_hbm [thread:$0]  %s197, 128, %s4, [#allocation3]
    $region33: #{tpu_custom_call.1} parent=1 // pred_fallthru
      _
    // Predicated region
    $region34: #{tpu_custom_call.1} parent=1 // pred_check
      _
    $region35: #{tpu_custom_call.1} parent=1 // pred_check_branch
      %201 = sbr.rel (0) target = $region37
    $region36: #{tpu_custom_call.1} parent=1 // pred_region
      %202 = dma.done [#allocation3], 128
    $region37: #{tpu_custom_call.1} parent=1 // pred_fallthru
      _
    %203 = vsyncpa [#allocation3], 1
    %204 = vsyncpa [#allocation4], 1
    %205 = vsyncpa [#allocation5], 1
    %206 = vsyncpa [#allocation8], 1

</llo_original>
